<compile_context>
chip_gen: v5e
topology: v5e:2x2
jax: 0.10.0
libtpu: 0.0.40
codegen_flags: <defaults>
</compile_context>

<pallas_src>
import jax
import jax.numpy as jnp
from jax.experimental import pallas as pl
from jax.experimental.pallas import tpu as pltpu

# Mirror of the torch module's `config` property (the print side effect lives in the wrapper).
MODEL_CONFIG = {"key": "value"}


def _identity_kernel(a_ref, o_ref):
    # Pure pass-through of the current tile (lane-dense last dim -> unmasked full-vreg stores).
    o_ref[...] = a_ref[...]


def _sublane_multiple(dtype) -> int:
    # f32/i32 -> 8, bf16/f16 -> 16, int8/fp8 -> 32 (sublane packing for non-full-extent blocks).
    return {4: 8, 2: 16, 1: 32}.get(jnp.dtype(dtype).itemsize, 8)


def _per_tile_byte_budget() -> int:
    # Keep double-buffered (in + out) tiles = 4 x tile comfortably under the scoped-VMEM default:
    #   v5e: 16 MiB default -> ~3 MiB tiles (12 MiB resident)
    #   v6e/v7x: 32 MiB default -> ~6 MiB tiles (24 MiB resident, headroom for internal scratch)
    try:
        kind = jax.devices()[0].device_kind.lower()
    except Exception:
        kind = ""
    if "v5 lite" in kind or "v5e" in kind or "v5litepod" in kind:
        return 3 * 1024 * 1024
    return 6 * 1024 * 1024


def _pick_lane_width(total: int) -> int:
    """Largest convenient multiple of 128 that evenly divides the flattened length (0 if none)."""
    for c in (4096, 2048, 1024, 512, 384, 256, 128):
        if total % c == 0:
            return c
    return 0


def identity_copy(a: jax.Array) -> jax.Array:
    """Materialize a genuine copy of `a` with a Pallas row-tiled, software-pipelined kernel."""
    if a.size == 0:
        return a

    orig_shape, orig_dtype = a.shape, a.dtype
    flat = a.reshape(-1)
    total = flat.shape[0]

    # Canonical lane-dense slab: (R, C) with C a multiple of 128.
    lane_c = _pick_lane_width(total)
    pad = 0
    if lane_c == 0:
        # Length not a multiple of 128: pad the flat view up to a clean slab, slice afterwards.
        # TODO(synk): the pad/slice pair costs one extra XLA pass for non-128-aligned sizes.
        lane_c = 1024
        pad = (-total) % lane_c
        flat = jnp.pad(flat, (0, pad))
    rows = flat.shape[0] // lane_c
    a2 = flat.reshape(rows, lane_c)

    itemsize = jnp.dtype(orig_dtype).itemsize
    sub = _sublane_multiple(orig_dtype)

    # Byte-budgeted tile rows (generation-aware), rounded to the sublane multiple.
    budget_rows = max(1, _per_tile_byte_budget() // max(1, lane_c * itemsize))
    tile_r = min(rows, budget_rows)
    tile_r = (tile_r // sub) * sub
    if tile_r < sub:
        # Tiny array: a single full-extent block is always legal (and trivially fits VMEM).
        tile_r = rows

    grid = (pl.cdiv(rows, tile_r),)  # ragged last block handled by masked stores

    out = pl.pallas_call(
        _identity_kernel,
        out_shape=jax.ShapeDtypeStruct((rows, lane_c), orig_dtype),
        grid=grid,
        in_specs=[pl.BlockSpec((tile_r, lane_c), lambda i: (i, 0))],
        out_specs=pl.BlockSpec((tile_r, lane_c), lambda i: (i, 0)),
        compiler_params=pltpu.CompilerParams(
            # Independent row tiles -> v7x shards the grid across its 2 TensorCores
            # (mem-bound, so the win is halving per-TC grid-step overhead, not 2x BW).
            dimension_semantics=("parallel",),
        ),
        cost_estimate=pl.CostEstimate(
            flops=0, transcendentals=0, bytes_accessed=2 * rows * lane_c * itemsize
        ),
    )(a2)

    out = out.reshape(-1)
    if pad:
        out = out[:total]
    return out.reshape(orig_shape)


def model_forward(a: jax.Array, *, materialize_copy: bool = False) -> jax.Array:
    """Equivalent of Model.forward: print(self.config); return a."""
    print(MODEL_CONFIG)  # per-call side effect; kept in the un-jitted Python wrapper
    if not materialize_copy:
        # Identity forward: the fastest kernel is no kernel at all.
        return a
    # Only if a caller genuinely needs a fresh buffer: real (non-aliased) Pallas copy.
    return identity_copy(a)


if __name__ == "__main__":
    key = jax.random.PRNGKey(0)
    k0, k1, k2 = jax.random.split(key, 3)

    # Small deterministic inputs exercising the different tiling paths.
    a_2d = jax.block_until_ready(jax.random.normal(k0, (256, 128), dtype=jnp.float32))
    a_1d = jax.block_until_ready(jax.random.normal(k1, (1000,), dtype=jnp.float32))      # pad path
    a_4d = jax.block_until_ready(
        jax.random.normal(k2, (2, 4, 16, 16), dtype=jnp.float32).astype(jnp.bfloat16)    # tiny slab
    )

    # 1) Optimal pass-through path (what the forward actually requires).
    out_fast = jax.block_until_ready(model_forward(a_2d))
    assert out_fast.shape == a_2d.shape and out_fast.dtype == a_2d.dtype
    assert (out_fast is a_2d) or bool(jnp.all(out_fast == a_2d))

    # 2) Pallas materialized-copy path: real non-aliased copy, byte-budgeted lane-dense tiles.
    for ref in (a_2d, a_1d, a_4d):
        out = jax.block_until_ready(model_forward(ref, materialize_copy=True))
        assert out.shape == ref.shape and out.dtype == ref.dtype
        assert bool(jnp.all(out == ref))

    print("KERNEL_OK")
</pallas_src>

<mosaic_0001>
module attributes {stable_mosaic.version = 11 : i64} {
  func.func @_identity_kernel(%arg0: i32, %arg1: memref<8x4096xf32, #tpu.memory_space<vmem>>, %arg2: memref<8x4096xf32, #tpu.memory_space<vmem>>) attributes {dimension_semantics = [#tpu.dimension_semantics<parallel>], iteration_bounds = array<i64: 1>, scalar_prefetch = 0 : i64, scratch_operands = 0 : i64, tpu.core_type = #tpu.core_type<tc>, window_params = [{transform_indices = @transform_0, window_bounds = array<i64: 8, 4096>}, {transform_indices = @transform_1, window_bounds = array<i64: 8, 4096>}]} {
    %c0 = arith.constant 0 : index
    %c0_0 = arith.constant 0 : index
    %0 = vector.load %arg1[%c0, %c0_0] : memref<8x4096xf32, #tpu.memory_space<vmem>>, vector<8x4096xf32>
    %c0_1 = arith.constant 0 : index
    %c0_2 = arith.constant 0 : index
    %1 = vector.load %arg2[%c0_1, %c0_2] : memref<8x4096xf32, #tpu.memory_space<vmem>>, vector<8x4096xf32>
    tpu.vector_store %arg2[%c0_1, %c0_2], %0 {strides = array<i32>} : memref<8x4096xf32, #tpu.memory_space<vmem>>, vector<8x4096xf32>,
    return
  }
  func.func @transform_0(%arg0: i32) -> (i32, i32) {
    %c0_i32 = arith.constant 0 : i32
    %c0_i32_0 = arith.constant 0 : i32
    return %arg0, %c0_i32 : i32, i32
  }
  func.func @transform_1(%arg0: i32) -> (i32, i32) {
    %c0_i32 = arith.constant 0 : i32
    %c0_i32_0 = arith.constant 0 : i32
    return %arg0, %c0_i32 : i32, i32
  }
}

</mosaic_0001>

<llo_original>
// kernel: tpu_custom_call.1
$region0: #{tpu_custom_call.1}
  #allocation0 [shape = 'u32[]', space=smem, size = 0x4, offset = 0x4, fixed_abs, tag = 'smem constant byte address 0x4 - core index']
  #allocation1 [shape = 'u32[72,128]{1,0:T(1,128)}', space=vmem, size = 0x9000, scoped, tag = 'internal scratch']
  %s0 = inlined_call_operand.hbm [shape: f32[8,4096], index: 0, kind: input, shape index: {}]
  %s1 = inlined_call_operand.hbm [shape: f32[8,4096], index: 1, kind: output, shape index: {}]
  %s2 = sld [smem:[#allocation0]]
  $region18: #{tpu_custom_call.1} parent=0
    _
  %s4 = ssub.s32 1, %s2
  %s5 = scalar_select 0, %s4, %s2
  $region1: #{tpu_custom_call.1} parent=0
    #allocation2 [shape = 'u8[131072]{0}', space=vmem, size = 0x20000, scoped, tag = 'input window, operand 0, single buffered']
    #allocation3 [shape = 's32[1]{0}', space=sflag, size = 0x4, scoped, tag = 'scoped memory for tpu_custom_call.1']
    #allocation4 [shape = 's32[1]{0}', space=sflag, size = 0x4, scoped, tag = 'scoped memory for tpu_custom_call.1']
    #allocation5 [shape = 'u8[131072]{0}', space=vmem, size = 0x20000, scoped, tag = 'output window, operand 0, single buffered']
    %6 = vsyncpa [#allocation3], 0
    %7 = vsyncpa [#allocation4], 0
    // Predicated region
    $region2: #{tpu_custom_call.1} parent=1 // pred_check
      _
    $region3: #{tpu_custom_call.1} parent=1 // pred_check_branch
      %9 = sbr.rel (0) target = $region5
    $region4: #{tpu_custom_call.1} parent=1 // pred_region
      %11 = vsyncadd [#allocation3], 0
      %s13 = sshll.u32 %s0, 4
      %s14 = int_to_ptr.hbm [resolvable:$true] %s13
      %s15 = sshll.u32 [#allocation2], 4
      %s16 = int_to_ptr.vmem [resolvable:$true] %s15
      %18 = dma.hbm_to_vmem [thread:$0]  %s14, 4096, %s16, [#allocation3]
    $region5: #{tpu_custom_call.1} parent=1 // pred_fallthru
      _
    // Predicated region
    $region6: #{tpu_custom_call.1} parent=1 // pred_check
      _
    $region7: #{tpu_custom_call.1} parent=1 // pred_check_branch
      %20 = sbr.rel (0) target = $region9
    $region8: #{tpu_custom_call.1} parent=1 // pred_region
      %22 = dma.done [#allocation3], 4096
    $region9: #{tpu_custom_call.1} parent=1 // pred_fallthru
      _
    %v23 = vld [vmem:[#allocation2] sm:$0xff]
    %v24 = vld [vmem:[#allocation2 + $0x8] sm:$0xff]
    %v25 = vld [vmem:[#allocation2 + $0x10] sm:$0xff]
    %v26 = vld [vmem:[#allocation2 + $0x18] sm:$0xff]
    %v27 = vld [vmem:[#allocation2 + $0x20] sm:$0xff]
    %v28 = vld [vmem:[#allocation2 + $0x28] sm:$0xff]
    %v29 = vld [vmem:[#allocation2 + $0x30] sm:$0xff]
    %v30 = vld [vmem:[#allocation2 + $0x38] sm:$0xff]
    %v31 = vld [vmem:[#allocation2 + $0x40] sm:$0xff]
    %v32 = vld [vmem:[#allocation2 + $0x48] sm:$0xff]
    %v33 = vld [vmem:[#allocation2 + $0x50] sm:$0xff]
    %v34 = vld [vmem:[#allocation2 + $0x58] sm:$0xff]
    %v35 = vld [vmem:[#allocation2 + $0x60] sm:$0xff]
    %v36 = vld [vmem:[#allocation2 + $0x68] sm:$0xff]
    %v37 = vld [vmem:[#allocation2 + $0x70] sm:$0xff]
    %v38 = vld [vmem:[#allocation2 + $0x78] sm:$0xff]
    %v39 = vld [vmem:[#allocation2 + $0x80] sm:$0xff]
    %v40 = vld [vmem:[#allocation2 + $0x88] sm:$0xff]
    %v41 = vld [vmem:[#allocation2 + $0x90] sm:$0xff]
    %v42 = vld [vmem:[#allocation2 + $0x98] sm:$0xff]
    %v43 = vld [vmem:[#allocation2 + $0xa0] sm:$0xff]
    %v44 = vld [vmem:[#allocation2 + $0xa8] sm:$0xff]
    %v45 = vld [vmem:[#allocation2 + $0xb0] sm:$0xff]
    %v46 = vld [vmem:[#allocation2 + $0xb8] sm:$0xff]
    %v47 = vld [vmem:[#allocation2 + $0xc0] sm:$0xff]
    %v48 = vld [vmem:[#allocation2 + $0xc8] sm:$0xff]
    %v49 = vld [vmem:[#allocation2 + $0xd0] sm:$0xff]
    %v50 = vld [vmem:[#allocation2 + $0xd8] sm:$0xff]
    %v51 = vld [vmem:[#allocation2 + $0xe0] sm:$0xff]
    %v52 = vld [vmem:[#allocation2 + $0xe8] sm:$0xff]
    %v53 = vld [vmem:[#allocation2 + $0xf0] sm:$0xff]
    %v54 = vld [vmem:[#allocation2 + $0xf8] sm:$0xff]
    %55 = vst [vmem:[#allocation5] sm:$0xff] %v23
    %56 = vst [vmem:[#allocation5 + $0x8] sm:$0xff] %v24
    %57 = vst [vmem:[#allocation5 + $0x10] sm:$0xff] %v25
    %58 = vst [vmem:[#allocation5 + $0x18] sm:$0xff] %v26
    %59 = vst [vmem:[#allocation5 + $0x20] sm:$0xff] %v27
    %60 = vst [vmem:[#allocation5 + $0x28] sm:$0xff] %v28
    %61 = vst [vmem:[#allocation5 + $0x30] sm:$0xff] %v29
    %62 = vst [vmem:[#allocation5 + $0x38] sm:$0xff] %v30
    %63 = vst [vmem:[#allocation5 + $0x40] sm:$0xff] %v31
    %64 = vst [vmem:[#allocation5 + $0x48] sm:$0xff] %v32
    %65 = vst [vmem:[#allocation5 + $0x50] sm:$0xff] %v33
    %66 = vst [vmem:[#allocation5 + $0x58] sm:$0xff] %v34
    %67 = vst [vmem:[#allocation5 + $0x60] sm:$0xff] %v35
    %68 = vst [vmem:[#allocation5 + $0x68] sm:$0xff] %v36
    %69 = vst [vmem:[#allocation5 + $0x70] sm:$0xff] %v37
    %70 = vst [vmem:[#allocation5 + $0x78] sm:$0xff] %v38
    %71 = vst [vmem:[#allocation5 + $0x80] sm:$0xff] %v39
    %72 = vst [vmem:[#allocation5 + $0x88] sm:$0xff] %v40
    %73 = vst [vmem:[#allocation5 + $0x90] sm:$0xff] %v41
    %74 = vst [vmem:[#allocation5 + $0x98] sm:$0xff] %v42
    %75 = vst [vmem:[#allocation5 + $0xa0] sm:$0xff] %v43
    %76 = vst [vmem:[#allocation5 + $0xa8] sm:$0xff] %v44
    %77 = vst [vmem:[#allocation5 + $0xb0] sm:$0xff] %v45
    %78 = vst [vmem:[#allocation5 + $0xb8] sm:$0xff] %v46
    %79 = vst [vmem:[#allocation5 + $0xc0] sm:$0xff] %v47
    %80 = vst [vmem:[#allocation5 + $0xc8] sm:$0xff] %v48
    %81 = vst [vmem:[#allocation5 + $0xd0] sm:$0xff] %v49
    %82 = vst [vmem:[#allocation5 + $0xd8] sm:$0xff] %v50
    %83 = vst [vmem:[#allocation5 + $0xe0] sm:$0xff] %v51
    %84 = vst [vmem:[#allocation5 + $0xe8] sm:$0xff] %v52
    %85 = vst [vmem:[#allocation5 + $0xf0] sm:$0xff] %v53
    %86 = vst [vmem:[#allocation5 + $0xf8] sm:$0xff] %v54
    // Predicated region
    $region10: #{tpu_custom_call.1} parent=1 // pred_check
      _
    $region11: #{tpu_custom_call.1} parent=1 // pred_check_branch
      %88 = sbr.rel (0) target = $region13
    $region12: #{tpu_custom_call.1} parent=1 // pred_region
      %90 = vsyncadd [#allocation4], 0
      %s92 = sshll.u32 [#allocation5], 4
      %s93 = int_to_ptr.vmem [resolvable:$true] %s92
      %s94 = sshll.u32 %s1, 4
      %s95 = int_to_ptr.hbm [resolvable:$true] %s94
      %97 = dma.vmem_to_hbm [thread:$0]  %s93, 4096, %s95, [#allocation4]
    $region13: #{tpu_custom_call.1} parent=1 // pred_fallthru
      _
    // Predicated region
    $region14: #{tpu_custom_call.1} parent=1 // pred_check
      _
    $region15: #{tpu_custom_call.1} parent=1 // pred_check_branch
      %99 = sbr.rel (0) target = $region17
    $region16: #{tpu_custom_call.1} parent=1 // pred_region
      %101 = dma.done [#allocation4], 4096
    $region17: #{tpu_custom_call.1} parent=1 // pred_fallthru
      _
    %102 = vsyncpa [#allocation3], 1
    %103 = vsyncpa [#allocation4], 1

</llo_original>
